<compile_context>
chip_gen: v7x
topology: tpu7x:2x2x1
jax: 0.10.0
libtpu: 0.0.40
codegen_flags: <defaults>
</compile_context>

<pallas_src>
import functools
from typing import NamedTuple

import jax
import jax.numpy as jnp
from jax.experimental import pallas as pl
from jax.experimental.pallas import tpu as pltpu


def _round_up(x, m):
    return ((x + m - 1) // m) * m


# --------------------------------------------------------------------------
# Kernels
# --------------------------------------------------------------------------
def _bd_kernel_tiled_x(x_ref, w_ref, b_ref, o_ref, acc_ref):
    # x_ref: (tm, tk)   w_ref: (tk, tn)   b_ref: (1, tn) f32
    # o_ref: (tm, tn)   acc_ref: (tm, tn) f32 scratch
    k = pl.program_id(2)

    @pl.when(k == 0)
    def _():
        # Fold bias into accumulator init (no epilogue add needed).
        acc_ref[...] = jnp.broadcast_to(b_ref[...], acc_ref.shape)

    acc_ref[...] += jnp.dot(
        x_ref[...], w_ref[...], preferred_element_type=jnp.float32
    )

    @pl.when(k == pl.num_programs(2) - 1)
    def _():
        o_ref[...] = acc_ref[...].astype(o_ref.dtype)


def _bd_kernel_panel_x(x_ref, w_ref, b_ref, o_ref, acc_ref, *, tk):
    # x_ref: (tm, Kp) resident K-panel, fetched from HBM once per M-tile.
    k = pl.program_id(2)

    @pl.when(k == 0)
    def _():
        acc_ref[...] = jnp.broadcast_to(b_ref[...], acc_ref.shape)

    start = pl.multiple_of(k * tk, 128)
    x_tile = x_ref[:, pl.ds(start, tk)]
    acc_ref[...] += jnp.dot(
        x_tile, w_ref[...], preferred_element_type=jnp.float32
    )

    @pl.when(k == pl.num_programs(2) - 1)
    def _():
        o_ref[...] = acc_ref[...].astype(o_ref.dtype)


# --------------------------------------------------------------------------
# One-time parameter fusion (done at init, NOT per forward call)
# --------------------------------------------------------------------------
class BlockDiagonalParams(NamedTuple):
    w: jax.Array           # (Kp, Np), compute dtype, pre-padded
    b: jax.Array           # (1, Np), f32, pre-padded
    in_features: int       # K (unpadded)
    out_features: int      # N (unpadded)
    tn: int
    tk: int


def fuse_block_diagonal_params(
    weights, biases, *, compute_dtype=jnp.bfloat16, tn=512, tk=512
):
    """Fuse per-block params into one [Kp, Np] weight + [1, Np] bias.

    weights: list of [block_out, in_features]  (PyTorch Linear layout)
    biases:  list of [block_out]
    Cast to compute_dtype and zero-pad K/N to tile multiples HERE, once,
    so the per-call forward never touches the weight outside the kernel.
    """
    w_fused = jnp.concatenate(weights, axis=0).T            # (K, N)
    b_fused = jnp.concatenate(biases, axis=0)[None, :]       # (1, N)
    K, N = w_fused.shape

    tn = min(tn, _round_up(N, 128))
    tk = min(tk, _round_up(K, 128))
    Kp, Np = _round_up(K, tk), _round_up(N, tn)

    w_fused = w_fused.astype(compute_dtype)
    b_fused = b_fused.astype(jnp.float32)
    if (Kp, Np) != (K, N):
        w_fused = jnp.pad(w_fused, ((0, Kp - K), (0, Np - N)))
    if Np != N:
        b_fused = jnp.pad(b_fused, ((0, 0), (0, Np - N)))

    return BlockDiagonalParams(w_fused, b_fused, K, N, tn, tk)


def _pick_tm(M, tm_max, sublane):
    if M <= tm_max:
        return _round_up(M, sublane)
    cands = [c for c in (512, 384, 256, 192, 128, 64)
             if c <= tm_max and c % sublane == 0]
    if not cands:
        cands = [_round_up(min(tm_max, M), sublane)]
    # Minimize Mp - M padding waste; prefer the larger tile on ties.
    return min(cands, key=lambda c: (_round_up(M, c) - M, -c))


# --------------------------------------------------------------------------
# Forward
# --------------------------------------------------------------------------
def block_diagonal_forward(x, params: BlockDiagonalParams, *, tm=512,
                           x_panel_bytes_limit=4 * 1024 * 1024):
    """Fused BlockDiagonal forward: out = x @ W_fused + b_fused."""
    orig_dtype = x.dtype
    K, N = params.in_features, params.out_features
    tn, tk = params.tn, params.tk
    Kp, Np = params.w.shape
    compute_dtype = params.w.dtype

    assert x.shape[-1] == K
    lead_shape = x.shape[:-1]
    x2d = x.reshape(-1, K).astype(compute_dtype)
    M = x2d.shape[0]

    sublane = 16 if jnp.dtype(compute_dtype).itemsize == 2 else 8
    tm = _pick_tm(M, tm, sublane)
    Mp = _round_up(M, tm)

    # Only the activation needs per-call padding (M remainder and, rarely, K).
    if (Mp, Kp) != (M, K):
        x2d = jnp.pad(x2d, ((0, Mp - M), (0, Kp - K)))

    # Small-M (decode-like) GEMV regime: few, large, lane-dense N steps.
    tn_run = tn
    itemsize_c = jnp.dtype(compute_dtype).itemsize
    if Mp <= 64 and tk * Np * itemsize_c <= 8 * 1024 * 1024:
        tn_run = Np

    # Keep the whole K-panel of x resident per M-tile when it is small enough:
    # cuts x HBM re-reads by Np // tn_run.
    x_panel_bytes = tm * Kp * itemsize_c
    use_panel = x_panel_bytes <= x_panel_bytes_limit

    if use_panel:
        kernel = functools.partial(_bd_kernel_panel_x, tk=tk)
        x_spec = pl.BlockSpec((tm, Kp), lambda i, j, k: (i, 0))
    else:
        kernel = _bd_kernel_tiled_x
        x_spec = pl.BlockSpec((tm, tk), lambda i, j, k: (i, k))

    grid = (Mp // tm, Np // tn_run, Kp // tk)

    # VMEM budget derived from actual tile working set (double-buffered
    # pipelined refs + f32 accumulator), capped below v7x's 64 MiB physical.
    itemsize_o = jnp.dtype(orig_dtype).itemsize
    x_blk = tm * (Kp if use_panel else tk) * itemsize_c
    w_blk = tk * tn_run * itemsize_c
    b_blk = tn_run * 4
    o_blk = tm * tn_run * itemsize_o
    acc_blk = tm * tn_run * 4
    needed = 2 * (x_blk + w_blk + b_blk + o_blk) + acc_blk
    vmem_limit = int(min(48 * 1024 * 1024,
                         max(needed + needed // 2 + (2 << 20), 24 << 20)))

    cost = pl.CostEstimate(
        flops=2 * Mp * Np * Kp,
        transcendentals=0,
        bytes_accessed=int(Mp * Kp * itemsize_c + Kp * Np * itemsize_c
                           + Np * 4 + Mp * Np * itemsize_o),
    )

    out2d = pl.pallas_call(
        kernel,
        out_shape=jax.ShapeDtypeStruct((Mp, Np), orig_dtype),
        grid_spec=pltpu.PrefetchScalarGridSpec(
            num_scalar_prefetch=0,
            grid=grid,
            in_specs=[
                x_spec,                                             # x
                pl.BlockSpec((tk, tn_run), lambda i, j, k: (k, j)),  # weight
                pl.BlockSpec((1, tn_run), lambda i, j, k: (0, j)),   # bias
            ],
            out_specs=pl.BlockSpec((tm, tn_run), lambda i, j, k: (i, j)),
            scratch_shapes=[pltpu.VMEM((tm, tn_run), jnp.float32)],
        ),
        compiler_params=pltpu.CompilerParams(
            dimension_semantics=("parallel", "parallel", "arbitrary"),
            vmem_limit_bytes=vmem_limit,
        ),
        cost_estimate=cost,
    )(x2d, params.w, params.b)

    if (Mp, Np) != (M, N):
        out2d = out2d[:M, :N]
    return out2d.reshape(*lead_shape, N)


# --------------------------------------------------------------------------
# Init + reference + tests
# --------------------------------------------------------------------------
def init_block_diagonal_params(key, in_features, out_features, num_blocks):
    """Mirror nn.Linear's default init (uniform +/- 1/sqrt(in_features))."""
    assert out_features % num_blocks == 0
    block_out = out_features // num_blocks
    bound = 1.0 / (in_features ** 0.5)
    weights, biases = [], []
    for _ in range(num_blocks):
        key, kw, kb = jax.random.split(key, 3)
        weights.append(jax.random.uniform(
            kw, (block_out, in_features), jnp.float32, -bound, bound))
        biases.append(jax.random.uniform(
            kb, (block_out,), jnp.float32, -bound, bound))
    return weights, biases


def _reference(x, weights, biases):
    outs = [jnp.dot(x, w.T, precision=jax.lax.Precision.HIGHEST) + b
            for w, b in zip(weights, biases)]
    return jnp.concatenate(outs, axis=-1)


if __name__ == "__main__":
    key = jax.random.PRNGKey(0)

    # Case 1: module's toy config (batch=2, seq=8, hidden=32, 4 blocks),
    # default bf16 compute path (f32 accumulation) -> looser tolerance.
    batch, seq = 2, 8
    in_f, out_f, nb = 32, 32, 4
    key, kx, kp = jax.random.split(key, 3)
    x = jax.random.normal(kx, (batch, seq, in_f), jnp.float32)
    weights, biases = init_block_diagonal_params(kp, in_f, out_f, nb)
    params_bf16 = fuse_block_diagonal_params(weights, biases)  # bf16, done once

    out = jax.block_until_ready(block_diagonal_forward(x, params_bf16))
    ref = _reference(x, weights, biases)
    assert out.shape == (batch, seq, out_f)
    assert out.dtype == x.dtype
    assert jnp.allclose(out, ref, atol=5e-2, rtol=5e-2), "mismatch (case 1, bf16)"

    # Case 2: f32 compute, odd M / non-128 N -> padding path, tight tolerance.
    b2, s2, in2, out2_f, nb2 = 3, 5, 48, 96, 3
    key, kx2, kp2 = jax.random.split(key, 3)
    x2 = jax.random.normal(kx2, (b2, s2, in2), jnp.float32)
    w2, bi2 = init_block_diagonal_params(kp2, in2, out2_f, nb2)
    params2 = fuse_block_diagonal_params(w2, bi2, compute_dtype=jnp.float32)

    out2 = jax.block_until_ready(block_diagonal_forward(x2, params2))
    ref2 = _reference(x2, w2, bi2)
    assert out2.shape == (b2, s2, out2_f)
    assert jnp.allclose(out2, ref2, atol=2e-3, rtol=2e-3), "mismatch (case 2, f32)"

    # Case 3: force multi-tile K and N (tk=tn=128, K=N=256) to exercise the
    # resident x K-panel slicing + K accumulation + wide-tn small-M path.
    b3, s3, in3, out3_f, nb3 = 4, 8, 256, 256, 2
    key, kx3, kp3 = jax.random.split(key, 3)
    x3 = jax.random.normal(kx3, (b3, s3, in3), jnp.float32)
    w3, bi3 = init_block_diagonal_params(kp3, in3, out3_f, nb3)
    params3 = fuse_block_diagonal_params(
        w3, bi3, compute_dtype=jnp.float32, tn=128, tk=128)

    out3 = jax.block_until_ready(block_diagonal_forward(x3, params3))
    ref3 = _reference(x3, w3, bi3)
    assert out3.shape == (b3, s3, out3_f)
    assert jnp.allclose(out3, ref3, atol=2e-3, rtol=2e-3), "mismatch (case 3, multi-tile)"

    print("KERNEL_OK")
</pallas_src>

<mosaic_0001>
module attributes {stable_mosaic.version = 11 : i64} {
  func.func @_bd_kernel_panel_x(%arg0: i32, %arg1: i32, %arg2: i32, %arg3: memref<16x128xbf16, #tpu.memory_space<vmem>>, %arg4: memref<128x128xbf16, #tpu.memory_space<vmem>>, %arg5: memref<1x128xf32, #tpu.memory_space<vmem>>, %arg6: memref<16x128xf32, #tpu.memory_space<vmem>>, %arg7: memref<16x128xf32, #tpu.memory_space<vmem>>) attributes {dimension_semantics = [#tpu.dimension_semantics<parallel>, #tpu.dimension_semantics<parallel>, #tpu.dimension_semantics<arbitrary>], iteration_bounds = array<i64: 1, 1, 1>, scalar_prefetch = 0 : i64, scratch_operands = 1 : i64, tpu.core_type = #tpu.core_type<tc>, window_params = [{transform_indices = @transform_0, window_bounds = array<i64: 16, 128>}, {transform_indices = @transform_1, window_bounds = array<i64: 128, 128>}, {transform_indices = @transform_2, window_bounds = array<i64: 1, 128>}, {transform_indices = @transform_3, window_bounds = array<i64: 16, 128>}]} {
    %c0_i32 = arith.constant 0 : i32
    %0 = arith.cmpi eq, %arg2, %c0_i32 : i32
    %1 = arith.extui %0 : i1 to i32
    %c0_i32_0 = arith.constant 0 : i32
    %2 = arith.cmpi ne, %1, %c0_i32_0 : i32
    scf.if %2 {
      %c0_9 = arith.constant 0 : index
      %c0_10 = arith.constant 0 : index
      %15 = vector.load %arg5[%c0_9, %c0_10] : memref<1x128xf32, #tpu.memory_space<vmem>>, vector<1x128xf32>
      %16 = vector.shape_cast %15 : vector<1x128xf32> to vector<1x128xf32>
      %17 = vector.broadcast %16 : vector<1x128xf32> to vector<16x128xf32>
      %c0_11 = arith.constant 0 : index
      %c0_12 = arith.constant 0 : index
      %18 = vector.load %arg7[%c0_11, %c0_12] : memref<16x128xf32, #tpu.memory_space<vmem>>, vector<16x128xf32>
      tpu.vector_store %arg7[%c0_11, %c0_12], %17 {strides = array<i32>} : memref<16x128xf32, #tpu.memory_space<vmem>>, vector<16x128xf32>,
    } else {
    }
    %c128_i32 = arith.constant 128 : i32
    %3 = arith.muli %arg2, %c128_i32 : i32
    %4 = tpu.assume_multiple %3, 128 : i32
    %c0 = arith.constant 0 : index
    %5 = arith.index_cast %4 : i32 to index
    %6 = vector.load %arg3[%c0, %5] : memref<16x128xbf16, #tpu.memory_space<vmem>>, vector<16x128xbf16>
    %c0_1 = arith.constant 0 : index
    %c0_2 = arith.constant 0 : index
    %7 = vector.load %arg7[%c0_1, %c0_2] : memref<16x128xf32, #tpu.memory_space<vmem>>, vector<16x128xf32>
    %c0_3 = arith.constant 0 : index
    %c0_4 = arith.constant 0 : index
    %8 = vector.load %arg4[%c0_3, %c0_4] : memref<128x128xbf16, #tpu.memory_space<vmem>>, vector<128x128xbf16>
    %cst = arith.constant dense<0.000000e+00> : vector<16x128xf32>
    %9 = tpu.matmul %6, %8, %cst {dimension_numbers = #tpu.dot_dimension_numbers<[1], [0], [0], [1], [0, 0, 1, 1], [], []>} : vector<16x128xbf16>, vector<128x128xbf16>, vector<16x128xf32> -> vector<16x128xf32>
    %10 = arith.addf %7, %9 : vector<16x128xf32>
    %c0_5 = arith.constant 0 : index
    %c0_6 = arith.constant 0 : index
    %11 = vector.load %arg7[%c0_5, %c0_6] : memref<16x128xf32, #tpu.memory_space<vmem>>, vector<16x128xf32>
    tpu.vector_store %arg7[%c0_5, %c0_6], %10 {strides = array<i32>} : memref<16x128xf32, #tpu.memory_space<vmem>>, vector<16x128xf32>,
    %c0_i32_7 = arith.constant 0 : i32
    %12 = arith.cmpi eq, %arg2, %c0_i32_7 : i32
    %13 = arith.extui %12 : i1 to i32
    %c0_i32_8 = arith.constant 0 : i32
    %14 = arith.cmpi ne, %13, %c0_i32_8 : i32
    scf.if %14 {
      %c0_9 = arith.constant 0 : index
      %c0_10 = arith.constant 0 : index
      %15 = vector.load %arg7[%c0_9, %c0_10] : memref<16x128xf32, #tpu.memory_space<vmem>>, vector<16x128xf32>
      %c0_11 = arith.constant 0 : index
      %c0_12 = arith.constant 0 : index
      %16 = vector.load %arg6[%c0_11, %c0_12] : memref<16x128xf32, #tpu.memory_space<vmem>>, vector<16x128xf32>
      tpu.vector_store %arg6[%c0_11, %c0_12], %15 {strides = array<i32>} : memref<16x128xf32, #tpu.memory_space<vmem>>, vector<16x128xf32>,
    } else {
    }
    return
  }
  func.func @transform_0(%arg0: i32, %arg1: i32, %arg2: i32) -> (i32, i32) {
    %c0_i32 = arith.constant 0 : i32
    %c0_i32_0 = arith.constant 0 : i32
    return %arg0, %c0_i32 : i32, i32
  }
  func.func @transform_1(%arg0: i32, %arg1: i32, %arg2: i32) -> (i32, i32) {
    %c0_i32 = arith.constant 0 : i32
    return %arg2, %arg1 : i32, i32
  }
  func.func @transform_2(%arg0: i32, %arg1: i32, %arg2: i32) -> (i32, i32) {
    %c0_i32 = arith.constant 0 : i32
    %c0_i32_0 = arith.constant 0 : i32
    return %c0_i32, %arg1 : i32, i32
  }
  func.func @transform_3(%arg0: i32, %arg1: i32, %arg2: i32) -> (i32, i32) {
    %c0_i32 = arith.constant 0 : i32
    return %arg0, %arg1 : i32, i32
  }
}

</mosaic_0001>

<llo_original>
// kernel: tpu_custom_call.1
$region0: #{tpu_custom_call.1}
  #allocation0 [shape = 'u32[]', space=smem, size = 0x4, offset = 0x4, fixed_abs, tag = 'smem constant byte address 0x4 - core index']
  #allocation1 [shape = 'u32[144,128]{1,0:T(1,128)}', space=vmem, size = 0x12000, scoped, tag = 'internal scratch']
  #allocation2 [shape = 'f32[16,128]{1,0:T(8,128)}', space=vmem, size = 0x2000, scoped, tag = 'scratch operand']
  %s0 = inlined_call_operand.hbm [shape: bf16[16,128], index: 0, kind: input, shape index: {}]
  %s1 = inlined_call_operand.hbm [shape: bf16[128,128], index: 1, kind: input, shape index: {}]
  %s2 = inlined_call_operand.vmem [shape: f32[1,128], index: 2, kind: input, shape index: {}]
  %s3 = inlined_call_operand.hbm [shape: f32[16,128], index: 3, kind: output, shape index: {}]
  %s4 = sld [smem:[#allocation0]]
  $region38: #{tpu_custom_call.1} parent=0
    _
  %s6 = ssub.s32 1, %s4
  %s7 = scalar_select 0, %s6, %s4
  $region1: #{tpu_custom_call.1} parent=0
    #allocation3 [shape = 'u8[4096]{0}', space=vmem, size = 0x1000, scoped, tag = 'input window, operand 0, single buffered']
    #allocation4 [shape = 's32[1]{0}', space=sflag, size = 0x4, scoped, tag = 'scoped memory for tpu_custom_call.1']
    #allocation5 [shape = 's32[1]{0}', space=sflag, size = 0x4, scoped, tag = 'scoped memory for tpu_custom_call.1']
    #allocation6 [shape = 'u8[32768]{0}', space=vmem, size = 0x8000, scoped, tag = 'input window, operand 1, single buffered']
    #allocation7 [shape = 's32[1]{0}', space=sflag, size = 0x4, scoped, tag = 'scoped memory for tpu_custom_call.1']
    #allocation8 [shape = 'u8[8192]{0}', space=vmem, size = 0x2000, scoped, tag = 'output window, operand 0, single buffered']
    %8 = vsyncpa [#allocation4], 0
    %9 = vsyncpa [#allocation7], 0
    %10 = vsyncpa [#allocation5], 0
    // Predicated region
    $region2: #{tpu_custom_call.1} parent=1 // pred_check
      _
    $region3: #{tpu_custom_call.1} parent=1 // pred_check_branch
      %12 = sbr.rel (0) target = $region5
    $region4: #{tpu_custom_call.1} parent=1 // pred_region
      %s14 = ssub.s32 128, 128
      %15 = vsyncadd [#allocation4], %s14
      %s16 = sshll.u32 [#allocation3], 4
      %s17 = int_to_ptr.vmem [resolvable:$true] %s16
      %22 = dma.hbm_to_vmem [thread:$0]  %s0, 128, %s17, [#allocation4], 64, 64, 4
    $region5: #{tpu_custom_call.1} parent=1 // pred_fallthru
      _
    // Predicated region
    $region6: #{tpu_custom_call.1} parent=1 // pred_check
      _
    $region7: #{tpu_custom_call.1} parent=1 // pred_check_branch
      %24 = sbr.rel (0) target = $region9
    $region8: #{tpu_custom_call.1} parent=1 // pred_region
      %s26 = ssub.s32 1024, 1024
      %27 = vsyncadd [#allocation7], %s26
      %s28 = sshll.u32 [#allocation6], 4
      %s29 = int_to_ptr.vmem [resolvable:$true] %s28
      %34 = dma.hbm_to_vmem [thread:$0]  %s1, 1024, %s29, [#allocation7], 64, 64, 4
    $region9: #{tpu_custom_call.1} parent=1 // pred_fallthru
      _
    // Predicated region
    $region10: #{tpu_custom_call.1} parent=1 // pred_check
      _
    $region11: #{tpu_custom_call.1} parent=1 // pred_check_branch
      %36 = sbr.rel (0) target = $region13
    $region12: #{tpu_custom_call.1} parent=1 // pred_region
      _
    $region13: #{tpu_custom_call.1} parent=1 // pred_fallthru
      _
    // Predicated region
    $region14: #{tpu_custom_call.1} parent=1 // pred_check
      _
    $region15: #{tpu_custom_call.1} parent=1 // pred_check_branch
      %38 = sbr.rel (0) target = $region17
    $region16: #{tpu_custom_call.1} parent=1 // pred_region
      %39 = dma.done [#allocation4], 128
    $region17: #{tpu_custom_call.1} parent=1 // pred_fallthru
      _
    // Predicated region
    $region18: #{tpu_custom_call.1} parent=1 // pred_check
      _
    $region19: #{tpu_custom_call.1} parent=1 // pred_check_branch
      %41 = sbr.rel (0) target = $region21
    $region20: #{tpu_custom_call.1} parent=1 // pred_region
      %42 = dma.done [#allocation7], 1024
    $region21: #{tpu_custom_call.1} parent=1 // pred_fallthru
      _
    %p44 = scmp.eq.s32.totalorder 0, 0
    // Predicated region
    $region22: #{tpu_custom_call.1} parent=1 // pred_check
      %p45 = pneg %p44
    $region23: #{tpu_custom_call.1} parent=1 // pred_check_branch
      %47 = sbr.rel (%p45) target = $region25
    $region24: #{tpu_custom_call.1} parent=1 // pred_region
      %v48 = vld [vmem:[%s2] sm:$0x1]
      %v50 = vlaneseq
      %v51 = vshrl.u32 %v50, 7
      %v52 = vsub.s32 0, %v51
      %v53 = vrot.slane %v48, %v52
      %55 = vst [vmem:[#allocation2] sm:$0xff] %v53
      %56 = vst [vmem:[#allocation2 + $0x8] sm:$0xff] %v53
    $region25: #{tpu_custom_call.1} parent=1 // pred_fallthru
      _
    %s57 = smul.u32 0, 128
    %s58 = sshra.s32 %s57, 7
    %s59 = sand.u32 %s57, 127
    %s60 = smul.addr %s58, 4
    %s61 = scalar_lea.vmem [#allocation3], %s60
    %v62 = vld [vmem:[%s61] sm:$0xf]
    %v63 = vld [vmem:[%s61 + $0x4] sm:$0xf]
    %v64 = vld [vmem:[#allocation2] sm:$0xff]
    %v65 = vld [vmem:[#allocation2 + $0x8] sm:$0xff]
    %v66 = vld [vmem:[#allocation6] sm:$0xf]
    %v67 = vld [vmem:[#allocation6 + $0x4] sm:$0xf]
    %v68 = vld [vmem:[#allocation6 + $0x8] sm:$0xf]
    %v69 = vld [vmem:[#allocation6 + $0xc] sm:$0xf]
    %v70 = vld [vmem:[#allocation6 + $0x10] sm:$0xf]
    %v71 = vld [vmem:[#allocation6 + $0x14] sm:$0xf]
    %v72 = vld [vmem:[#allocation6 + $0x18] sm:$0xf]
    %v73 = vld [vmem:[#allocation6 + $0x1c] sm:$0xf]
    %v74 = vld [vmem:[#allocation6 + $0x20] sm:$0xf]
    %v75 = vld [vmem:[#allocation6 + $0x24] sm:$0xf]
    %v76 = vld [vmem:[#allocation6 + $0x28] sm:$0xf]
    %v77 = vld [vmem:[#allocation6 + $0x2c] sm:$0xf]
    %v78 = vld [vmem:[#allocation6 + $0x30] sm:$0xf]
    %v79 = vld [vmem:[#allocation6 + $0x34] sm:$0xf]
    %v80 = vld [vmem:[#allocation6 + $0x38] sm:$0xf]
    %v81 = vld [vmem:[#allocation6 + $0x3c] sm:$0xf]
    %v84 = vunpack.c.l.b16 %v62
    %v85 = vunpack.c.l.b16 %v63
    %v86 = vpack.c.b16 %v85, %v84
    %v104 = vunpack.c.l.b16 %v66
    %v105 = vunpack.c.l.b16 %v67
    %v106 = vunpack.c.l.b16 %v68
    %v107 = vunpack.c.l.b16 %v69
    %v108 = vunpack.c.l.b16 %v70
    %v109 = vunpack.c.l.b16 %v71
    %v110 = vunpack.c.l.b16 %v72
    %v111 = vunpack.c.l.b16 %v73
    %v112 = vunpack.c.l.b16 %v74
    %v113 = vunpack.c.l.b16 %v75
    %v114 = vunpack.c.l.b16 %v76
    %v115 = vunpack.c.l.b16 %v77
    %v116 = vunpack.c.l.b16 %v78
    %v117 = vunpack.c.l.b16 %v79
    %v118 = vunpack.c.l.b16 %v80
    %v119 = vunpack.c.l.b16 %v81
    %v120 = vpack.c.b16 %v105, %v104
    %v121 = vpack.c.b16 %v107, %v106
    %v122 = vpack.c.b16 %v109, %v108
    %v123 = vpack.c.b16 %v111, %v110
    %v124 = vpack.c.b16 %v113, %v112
    %v125 = vpack.c.b16 %v115, %v114
    %v126 = vpack.c.b16 %v117, %v116
    %v127 = vpack.c.b16 %v119, %v118
    %136 = vmatprep.subr.bf16.mxu0 0
    %137 = vmatpush1.bf16.msra.mxu0 %v120
    %138 = vmatprep.subr.bf16.mxu0 0
    %139 = vmatpush1.bf16.msra.mxu0 %v121
    %140 = vmatprep.subr.bf16.mxu0 0
    %141 = vmatpush1.bf16.msra.mxu0 %v122
    %142 = vmatprep.subr.bf16.mxu0 0
    %143 = vmatpush1.bf16.msra.mxu0 %v123
    %144 = vmatprep.subr.bf16.mxu0 0
    %145 = vmatpush1.bf16.msra.mxu0 %v124
    %146 = vmatprep.subr.bf16.mxu0 0
    %147 = vmatpush1.bf16.msra.mxu0 %v125
    %148 = vmatprep.subr.bf16.mxu0 0
    %149 = vmatpush1.bf16.msra.mxu0 %v126
    %150 = vmatprep.subr.bf16.mxu0 0
    %151 = vmatpush1.bf16.msra.mxu0 %v127
    %152 = vmatprep.subr.bf16.mxu0 0
    %153 = vmatpush1.bf16.msra.mxu0 0
    %154 = vmatprep.subr.bf16.mxu0 0
    %155 = vmatpush1.bf16.msra.mxu0 0
    %156 = vmatprep.subr.bf16.mxu0 0
    %157 = vmatpush1.bf16.msra.mxu0 0
    %158 = vmatprep.subr.bf16.mxu0 0
    %159 = vmatpush1.bf16.msra.mxu0 0
    %160 = vmatprep.subr.bf16.mxu0 0
    %161 = vmatpush1.bf16.msra.mxu0 0
    %162 = vmatprep.subr.bf16.mxu0 0
    %163 = vmatpush1.bf16.msra.mxu0 0
    %164 = vmatprep.subr.bf16.mxu0 0
    %165 = vmatpush1.bf16.msra.mxu0 0
    %166 = vmatprep.subr.bf16.mxu0 0
    %167 = vmatpush1.bf16.msra.mxu0 0
    %168 = vmatprep.mubr.bf16.mxu0 0
    %169 = vmatmul.mubr.bf16.gmra.mrb[0].mxu0 %v86
    %v170 = vpop.f32.mrb[0].mxu0
    %v171 = vadd.f32 0.0, %v170
    %v172 = vpop.f32.mrb[0].mxu0
    %v173 = vpop.f32.mrb[0].mxu0
    %v174 = vadd.f32 0.0, %v173
    %v175 = vpop.f32.mrb[0].mxu0
    %176 = vdwg.mxu0
    %v177 = vadd.f32 %v64, %v171
    %v178 = vadd.f32 %v65, %v174
    %179 = vst [vmem:[#allocation2] sm:$0xff] %v177
    %180 = vst [vmem:[#allocation2 + $0x8] sm:$0xff] %v178
    // Predicated region
    $region26: #{tpu_custom_call.1} parent=1 // pred_check
      %p181 = pneg %p44
    $region27: #{tpu_custom_call.1} parent=1 // pred_check_branch
      %183 = sbr.rel (%p181) target = $region29
    $region28: #{tpu_custom_call.1} parent=1 // pred_region
      %v184 = vld [vmem:[#allocation2] sm:$0xff]
      %v185 = vld [vmem:[#allocation2 + $0x8] sm:$0xff]
      %186 = vst [vmem:[#allocation8] sm:$0xff] %v184
      %187 = vst [vmem:[#allocation8 + $0x8] sm:$0xff] %v185
    $region29: #{tpu_custom_call.1} parent=1 // pred_fallthru
      _
    // Predicated region
    $region30: #{tpu_custom_call.1} parent=1 // pred_check
      _
    $region31: #{tpu_custom_call.1} parent=1 // pred_check_branch
      %189 = sbr.rel (0) target = $region33
    $region32: #{tpu_custom_call.1} parent=1 // pred_region
      %s191 = ssub.s32 256, 256
      %192 = vsyncadd [#allocation5], %s191
      %s193 = sshll.u32 [#allocation8], 4
      %s194 = int_to_ptr.vmem [resolvable:$true] %s193
      %199 = dma.vmem_to_hbm [thread:$0]  %s194, 256, %s3, [#allocation5], 128, 128, 8
    $region33: #{tpu_custom_call.1} parent=1 // pred_fallthru
      _
    // Predicated region
    $region34: #{tpu_custom_call.1} parent=1 // pred_check
      _
    $region35: #{tpu_custom_call.1} parent=1 // pred_check_branch
      %201 = sbr.rel (0) target = $region37
    $region36: #{tpu_custom_call.1} parent=1 // pred_region
      %202 = dma.done [#allocation5], 256
    $region37: #{tpu_custom_call.1} parent=1 // pred_fallthru
      _
    %203 = vsyncpa [#allocation4], 1
    %204 = vsyncpa [#allocation7], 1
    %205 = vsyncpa [#allocation5], 1

</llo_original>
